<compile_context>
chip_gen: v5e
topology: v5e:2x2
jax: 0.10.0
libtpu: 0.0.40
codegen_flags: <defaults>
</compile_context>

<pallas_src>
import functools

import jax
import jax.numpy as jnp
from jax.experimental import pallas as pl
from jax.experimental.pallas import tpu as pltpu


_TARGET_BLOCK_BYTES = 2 * 1024 * 1024      # ~2 MiB logits blocks: past the DMA knee


def _cdiv(a, b):
    return -(-a // b)


def _per_row_bytes(tk, itemsize):
    # Double-buffered native x block + native select temp + mask + ~2 f32 work tiles,
    # plus lane-padded (tn, 1)/(tn, 2) small streams and scratch.
    return tk * (3 * itemsize + 12) + 4096


def _default_vmem_budget():
    """64 MiB on 128-MiB-VMEM parts (v5e / v6e), 32 MiB on v7x (64 MiB physical)."""
    try:
        cap = pltpu.get_tpu_info().vmem_capacity_bytes
    except Exception:       # not on TPU / API drift -> conservative default
        cap = 0
    return 64 * 1024 * 1024 if cap >= 96 * 1024 * 1024 else 32 * 1024 * 1024


def _tile_plan(N, C, itemsize, vmem_limit_bytes):
    """Pick (tn, tk): row / class tile sizes for the logits blocks."""
    align = max(8, 32 // itemsize)            # sublane packing of the logits dtype
    budget = int(vmem_limit_bytes * 0.8)      # headroom: semaphores / compiler scratch

    # --- class tile: full C unless even a minimal row tile would blow the budget ---
    tk = C
    if align * _per_row_bytes(C, itemsize) > budget and C % 128 == 0:
        max_tk = ((budget // align) - 4096) // (3 * itemsize + 12)
        t = min(max(128, max_tk // 128 * 128), C)
        while t >= 128 and C % t:
            t -= 128
        if t >= 128:
            tk = t
    # TODO(synk): huge C that is not a multiple of 128 still falls back to tk=C; tiling it
    # would need wrapper-side class padding with -inf columns.

    # --- row tile: ~2 MiB blocks, VMEM-capped, >=4 row steps when the batch allows ---
    tn = max(align, _TARGET_BLOCK_BYTES // (tk * itemsize))
    tn = min(tn, max(align, budget // _per_row_bytes(tk, itemsize)))
    if N >= 4 * align:
        tn = min(tn, N // 4)                  # keep >= 4 row steps (v7x megacore)
    tn = max(align, (tn // align) * align)
    tn = min(tn, _cdiv(N, align) * align)     # never larger than the padded batch

    # Prefer a tn that (a) divides N (no pad copy of the logits) and (b) gives an even
    # row-step count (both v7x TensorCores get equal work); search just below the target.
    lo = max(align, (tn // 2 // align) * align)

    def _score(t):
        steps = _cdiv(N, t)
        return (N % t == 0, steps % 2 == 0 or steps == 1, t)

    tn = max(range(lo, tn + 1, align), key=_score)
    return tn, tk


def _rejection_ce_kernel(x_ref, yw_ref, loss_ref, m_sc, z_sc, xy_sc, xm_sc,
                         *, o, rejection_index, tk):
    # x_ref:    (tn, tk) logits, native dtype (bf16 stays packed on the VPU)
    # yw_ref:   (tn, 2) int32: column 0 = label, column 1 = bitcast(float32 weight[y])
    # loss_ref: (tn, 1) float32
    # scratch:  m_sc / z_sc / xy_sc / xm_sc, each (tn, 1) float32, persist across the
    #           class ("arbitrary", last) grid axis.
    k = pl.program_id(1)

    @pl.when(k == 0)
    def _init():
        m_sc[...] = jnp.full_like(m_sc, -jnp.inf)
        z_sc[...] = jnp.zeros_like(z_sc)
        xy_sc[...] = jnp.zeros_like(xy_sc)

    x = x_ref[...]                                   # (tn, tk), native dtype
    y = yw_ref[:, 0:1]                               # (tn, 1) int32 labels

    # Picked logit x[n, y_n]: one-hot masked lane reduce on the native tile.  The class-id
    # iota is a single (1, tk) lane vector; broadcasting against y does the rest (no
    # (tn, tk) iota materialized per step).
    cls = jax.lax.broadcasted_iota(jnp.int32, (1, tk), 1) + k * tk
    picked = jnp.sum(jnp.where(cls == y, x, jnp.zeros([], x.dtype)),
                     axis=-1, keepdims=True)         # exact: at most one nonzero per row
    xy_sc[...] += picked.astype(jnp.float32)

    # Rejection-class logit: static column slice of the class tile that owns it.
    r_tile, r_col = rejection_index // tk, rejection_index % tk

    @pl.when(k == r_tile)
    def _take_rejection():
        xm_sc[...] = x[:, r_col:r_col + 1].astype(jnp.float32)

    # Online softmax statistics; the f32 upcast is fused into the exp input (single
    # full-width transcendental).
    m_tile = jnp.max(x, axis=-1, keepdims=True).astype(jnp.float32)
    m_new = jnp.maximum(m_sc[...], m_tile)
    z_sc[...] = z_sc[...] * jnp.exp(m_sc[...] - m_new) + jnp.sum(
        jnp.exp(x.astype(jnp.float32) - m_new), axis=-1, keepdims=True)
    m_sc[...] = m_new

    @pl.when(k == pl.num_programs(1) - 1)
    def _finalize():
        w_y = pltpu.bitcast(yw_ref[:, 1:2], jnp.float32)           # (tn, 1)
        num = (jnp.float32(o) * jnp.exp(xy_sc[...] - m_sc[...])
               + jnp.exp(xm_sc[...] - m_sc[...]))
        loss_ref[...] = -(w_y * (jnp.log(num) - jnp.log(z_sc[...])))


def rejection_cross_entropy_loss(x, y, weight=None, *, o, rejection_index,
                                 tn=None, tk=None, vmem_limit_bytes=None):
    """x: (N, C) float logits; y: (N,) integer labels; weight: optional (C,) floats.
    Returns the per-sample loss (reduction='none'), shape (N,), float32."""
    N, C = x.shape
    assert 0 <= rejection_index < C

    itemsize = jnp.dtype(x.dtype).itemsize
    if vmem_limit_bytes is None:
        vmem_limit_bytes = _default_vmem_budget()
    tn_auto, tk_auto = _tile_plan(N, C, itemsize, vmem_limit_bytes)
    tn = tn_auto if tn is None else int(tn)
    tk = tk_auto if tk is None else int(tk)
    assert C % tk == 0 and (tk == C or tk % 128 == 0), (C, tk)
    assert tn % 8 == 0 or tn == N, (N, tn)

    n_row = _cdiv(N, tn)
    n_cls = C // tk
    Np = n_row * tn

    # Labels + gathered per-sample weights packed into one (N, 2) int32 stream.
    y_i32 = y.astype(jnp.int32).reshape(N, 1)
    if weight is None:
        w_y = jnp.ones((N, 1), jnp.float32)
    else:
        w_y = weight.astype(jnp.float32)[y].reshape(N, 1)
    yw = jnp.concatenate([y_i32, jax.lax.bitcast_convert_type(w_y, jnp.int32)], axis=1)

    if Np != N:   # ragged batch: pad rows (label 0 / weight 0 -> pad loss = -0.0), slice later
        x = jnp.pad(x, ((0, Np - N), (0, 0)))
        yw = jnp.pad(yw, ((0, Np - N), (0, 0)))

    # Never declare a scoped-VMEM limit smaller than one minimal block actually needs
    # (pathological huge C that cannot be class-tiled).
    vmem_limit = max(int(vmem_limit_bytes),
                     int(tn * _per_row_bytes(tk, itemsize) * 1.25))

    kernel = functools.partial(_rejection_ce_kernel, o=float(o),
                               rejection_index=int(rejection_index), tk=tk)

    cost = pl.CostEstimate(
        flops=6 * Np * C,
        transcendentals=Np * C + 6 * Np,
        bytes_accessed=Np * C * itemsize + Np * 12,
    )

    # TODO(synk): a lane-dense (1, tn) output layout would avoid masked vst on the (tn, 1)
    # stores, but needs an in-kernel sublane->lane relayout; output bytes are <=1/C of the
    # input stream so it stays row-major here.
    loss = pl.pallas_call(
        kernel,
        out_shape=jax.ShapeDtypeStruct((Np, 1), jnp.float32),
        grid_spec=pltpu.PrefetchScalarGridSpec(
            num_scalar_prefetch=0,
            grid=(n_row, n_cls),
            in_specs=[
                pl.BlockSpec((tn, tk), lambda i, k: (i, k)),   # logits (native dtype)
                pl.BlockSpec((tn, 2), lambda i, k: (i, 0)),    # packed labels / weights
            ],
            out_specs=pl.BlockSpec((tn, 1), lambda i, k: (i, 0)),
            scratch_shapes=[pltpu.VMEM((tn, 1), jnp.float32) for _ in range(4)],
        ),
        compiler_params=pltpu.CompilerParams(
            dimension_semantics=("parallel", "arbitrary"),
            vmem_limit_bytes=vmem_limit,
        ),
        cost_estimate=cost,
    )(x, yw)
    return loss[:N, 0]


def _reference(x, y, weight, *, o, rejection_index):
    p = jax.nn.softmax(x.astype(jnp.float32), axis=-1)
    p_m = p[:, rejection_index][:, None]
    log_adj = jnp.log(p * o + p_m)
    picked = jnp.take_along_axis(log_adj, y[:, None].astype(jnp.int32), axis=-1)[:, 0]
    w_y = (jnp.ones_like(picked) if weight is None
           else weight.astype(jnp.float32)[y])
    return -(w_y * picked)


if __name__ == "__main__":
    key = jax.random.PRNGKey(0)
    kx, ky, kx2, ky2 = jax.random.split(key, 4)

    # ---- shape 1: small, single class tile ----
    N, C = 64, 32
    o = 4.0                      # payoff, 1 < o < num_classes
    rejection_index = 2

    x = jax.random.normal(kx, (N, C), dtype=jnp.float32)
    y = jax.random.randint(ky, (N,), 0, C, dtype=jnp.int32)
    weight = 0.5 + jnp.arange(C, dtype=jnp.float32) / (2.0 * C)

    ref = _reference(x, y, weight, o=o, rejection_index=rejection_index)

    # 1) Explicit small row tile -> 8 pipelined row steps.
    loss = jax.block_until_ready(rejection_cross_entropy_loss(
        x, y, weight, o=o, rejection_index=rejection_index, tn=8))
    assert loss.shape == (N,)
    assert jnp.allclose(loss, ref, rtol=1e-5, atol=1e-5), (loss, ref)

    # 2) Auto-chosen tiles (block-byte target + even >=4 row steps).
    loss_auto = jax.block_until_ready(rejection_cross_entropy_loss(
        x, y, weight, o=o, rejection_index=rejection_index))
    assert jnp.allclose(loss_auto, ref, rtol=1e-5, atol=1e-5)

    # 3) bf16 logits stream at half the HBM bytes; max/select run in bf16, exp in f32.
    x_bf16 = x.astype(jnp.bfloat16)
    ref_bf16 = _reference(x_bf16.astype(jnp.float32), y, weight,
                          o=o, rejection_index=rejection_index)
    loss_bf16 = jax.block_until_ready(rejection_cross_entropy_loss(
        x_bf16, y, weight, o=o, rejection_index=rejection_index, tn=16))
    assert jnp.allclose(loss_bf16, ref_bf16, rtol=1e-4, atol=1e-4)

    # 4) Class-tiled online-softmax path + ragged batch padding + weight=None.
    N2, C2 = 60, 256
    o2, rej2 = 3.0, 200          # rejection class sits in the second class tile
    x2 = jax.random.normal(kx2, (N2, C2), dtype=jnp.float32)
    y2 = jax.random.randint(ky2, (N2,), 0, C2, dtype=jnp.int32)
    ref2 = _reference(x2, y2, None, o=o2, rejection_index=rej2)
    loss2 = jax.block_until_ready(rejection_cross_entropy_loss(
        x2, y2, None, o=o2, rejection_index=rej2, tn=16, tk=128))
    assert loss2.shape == (N2,)
    assert jnp.allclose(loss2, ref2, rtol=1e-5, atol=1e-5), (loss2, ref2)

    print("KERNEL_OK")
</pallas_src>

<mosaic_0001>
module attributes {stable_mosaic.version = 11 : i64} {
  func.func @_rejection_ce_kernel(%arg0: i32, %arg1: i32, %arg2: memref<8x32xf32, #tpu.memory_space<vmem>>, %arg3: memref<8x2xi32, #tpu.memory_space<vmem>>, %arg4: memref<8x1xf32, #tpu.memory_space<vmem>>, %arg5: memref<8x1xf32, #tpu.memory_space<vmem>>, %arg6: memref<8x1xf32, #tpu.memory_space<vmem>>, %arg7: memref<8x1xf32, #tpu.memory_space<vmem>>, %arg8: memref<8x1xf32, #tpu.memory_space<vmem>>) attributes {dimension_semantics = [#tpu.dimension_semantics<parallel>, #tpu.dimension_semantics<arbitrary>], iteration_bounds = array<i64: 8, 1>, scalar_prefetch = 0 : i64, scratch_operands = 4 : i64, tpu.core_type = #tpu.core_type<tc>, window_params = [{transform_indices = @transform_0, window_bounds = array<i64: 8, 32>}, {transform_indices = @transform_1, window_bounds = array<i64: 8, 2>}, {transform_indices = @transform_2, window_bounds = array<i64: 8, 1>}]} {
    %c0_i32 = arith.constant 0 : i32
    %0 = arith.cmpi eq, %arg1, %c0_i32 : i32
    %1 = arith.extui %0 : i1 to i32
    %c0_i32_0 = arith.constant 0 : i32
    %2 = arith.cmpi ne, %1, %c0_i32_0 : i32
    scf.if %2 {
      %cst_25 = arith.constant 0xFF800000 : f32
      %42 = vector.broadcast %cst_25 : f32 to vector<8x1xf32>
      %c0_26 = arith.constant 0 : index
      %c0_27 = arith.constant 0 : index
      %43 = vector.load %arg5[%c0_26, %c0_27] : memref<8x1xf32, #tpu.memory_space<vmem>>, vector<8x1xf32>
      tpu.vector_store %arg5[%c0_26, %c0_27], %42 {strides = array<i32>} : memref<8x1xf32, #tpu.memory_space<vmem>>, vector<8x1xf32>,
      %cst_28 = arith.constant 0.000000e+00 : f32
      %44 = vector.broadcast %cst_28 : f32 to vector<8x1xf32>
      %c0_29 = arith.constant 0 : index
      %c0_30 = arith.constant 0 : index
      %45 = vector.load %arg6[%c0_29, %c0_30] : memref<8x1xf32, #tpu.memory_space<vmem>>, vector<8x1xf32>
      tpu.vector_store %arg6[%c0_29, %c0_30], %44 {strides = array<i32>} : memref<8x1xf32, #tpu.memory_space<vmem>>, vector<8x1xf32>,
      %cst_31 = arith.constant 0.000000e+00 : f32
      %46 = vector.broadcast %cst_31 : f32 to vector<8x1xf32>
      %c0_32 = arith.constant 0 : index
      %c0_33 = arith.constant 0 : index
      %47 = vector.load %arg7[%c0_32, %c0_33] : memref<8x1xf32, #tpu.memory_space<vmem>>, vector<8x1xf32>
      tpu.vector_store %arg7[%c0_32, %c0_33], %46 {strides = array<i32>} : memref<8x1xf32, #tpu.memory_space<vmem>>, vector<8x1xf32>,
    } else {
    }
    %c0 = arith.constant 0 : index
    %c0_1 = arith.constant 0 : index
    %3 = vector.load %arg2[%c0, %c0_1] : memref<8x32xf32, #tpu.memory_space<vmem>>, vector<8x32xf32>
    %c0_2 = arith.constant 0 : index
    %c0_3 = arith.constant 0 : index
    %4 = vector.load %arg3[%c0_2, %c0_3] : memref<8x2xi32, #tpu.memory_space<vmem>>, vector<8x1xi32>
    %5 = tpu.iota {dimensions = array<i32: 1>} : vector<1x32xi32>
    %c32_i32 = arith.constant 32 : i32
    %6 = arith.muli %arg1, %c32_i32 : i32
    %7 = vector.broadcast %6 : i32 to vector<1x32xi32>
    %8 = arith.addi %5, %7 : vector<1x32xi32>
    %9 = vector.broadcast %8 : vector<1x32xi32> to vector<8x32xi32>
    %10 = vector.broadcast %4 : vector<8x1xi32> to vector<8x32xi32>
    %11 = arith.cmpi eq, %9, %10 : vector<8x32xi32>
    %cst = arith.constant 0.000000e+00 : f32
    %12 = vector.broadcast %cst : f32 to vector<8x32xf32>
    %13 = arith.select %11, %3, %12 : vector<8x32xi1>, vector<8x32xf32>
    %cst_4 = arith.constant dense<0.000000e+00> : vector<8xf32>
    %14 = vector.multi_reduction <add>, %13, %cst_4 [1] : vector<8x32xf32> to vector<8xf32>
    %15 = vector.shape_cast %14 : vector<8xf32> to vector<8x1xf32>
    %c0_5 = arith.constant 0 : index
    %c0_6 = arith.constant 0 : index
    %16 = vector.load %arg7[%c0_5, %c0_6] : memref<8x1xf32, #tpu.memory_space<vmem>>, vector<8x1xf32>
    %17 = arith.addf %16, %15 : vector<8x1xf32>
    %c0_7 = arith.constant 0 : index
    %c0_8 = arith.constant 0 : index
    %18 = vector.load %arg7[%c0_7, %c0_8] : memref<8x1xf32, #tpu.memory_space<vmem>>, vector<8x1xf32>
    tpu.vector_store %arg7[%c0_7, %c0_8], %17 {strides = array<i32>} : memref<8x1xf32, #tpu.memory_space<vmem>>, vector<8x1xf32>,
    %c0_i32_9 = arith.constant 0 : i32
    %19 = arith.cmpi eq, %arg1, %c0_i32_9 : i32
    %20 = arith.extui %19 : i1 to i32
    %c0_i32_10 = arith.constant 0 : i32
    %21 = arith.cmpi ne, %20, %c0_i32_10 : i32
    scf.if %21 {
      %42 = vector.extract_strided_slice %3 {offsets = [0, 2], sizes = [8, 1], strides = [1, 1]} : vector<8x32xf32> to vector<8x1xf32>
      %c0_25 = arith.constant 0 : index
      %c0_26 = arith.constant 0 : index
      %43 = vector.load %arg8[%c0_25, %c0_26] : memref<8x1xf32, #tpu.memory_space<vmem>>, vector<8x1xf32>
      tpu.vector_store %arg8[%c0_25, %c0_26], %42 {strides = array<i32>} : memref<8x1xf32, #tpu.memory_space<vmem>>, vector<8x1xf32>,
    } else {
    }
    %cst_11 = arith.constant dense<0xFF800000> : vector<8xf32>
    %22 = vector.multi_reduction <maximumf>, %3, %cst_11 [1] : vector<8x32xf32> to vector<8xf32>
    %23 = vector.shape_cast %22 : vector<8xf32> to vector<8x1xf32>
    %c0_12 = arith.constant 0 : index
    %c0_13 = arith.constant 0 : index
    %24 = vector.load %arg5[%c0_12, %c0_13] : memref<8x1xf32, #tpu.memory_space<vmem>>, vector<8x1xf32>
    %25 = arith.maximumf %24, %23 : vector<8x1xf32>
    %c0_14 = arith.constant 0 : index
    %c0_15 = arith.constant 0 : index
    %26 = vector.load %arg6[%c0_14, %c0_15] : memref<8x1xf32, #tpu.memory_space<vmem>>, vector<8x1xf32>
    %c0_16 = arith.constant 0 : index
    %c0_17 = arith.constant 0 : index
    %27 = vector.load %arg5[%c0_16, %c0_17] : memref<8x1xf32, #tpu.memory_space<vmem>>, vector<8x1xf32>
    %28 = arith.subf %27, %25 : vector<8x1xf32>
    %29 = math.exp %28 : vector<8x1xf32>
    %30 = arith.mulf %26, %29 : vector<8x1xf32>
    %31 = vector.broadcast %25 : vector<8x1xf32> to vector<8x32xf32>
    %32 = arith.subf %3, %31 : vector<8x32xf32>
    %33 = math.exp %32 : vector<8x32xf32>
    %cst_18 = arith.constant dense<0.000000e+00> : vector<8xf32>
    %34 = vector.multi_reduction <add>, %33, %cst_18 [1] : vector<8x32xf32> to vector<8xf32>
    %35 = vector.shape_cast %34 : vector<8xf32> to vector<8x1xf32>
    %36 = arith.addf %30, %35 : vector<8x1xf32>
    %c0_19 = arith.constant 0 : index
    %c0_20 = arith.constant 0 : index
    %37 = vector.load %arg6[%c0_19, %c0_20] : memref<8x1xf32, #tpu.memory_space<vmem>>, vector<8x1xf32>
    tpu.vector_store %arg6[%c0_19, %c0_20], %36 {strides = array<i32>} : memref<8x1xf32, #tpu.memory_space<vmem>>, vector<8x1xf32>,
    %c0_21 = arith.constant 0 : index
    %c0_22 = arith.constant 0 : index
    %38 = vector.load %arg5[%c0_21, %c0_22] : memref<8x1xf32, #tpu.memory_space<vmem>>, vector<8x1xf32>
    tpu.vector_store %arg5[%c0_21, %c0_22], %25 {strides = array<i32>} : memref<8x1xf32, #tpu.memory_space<vmem>>, vector<8x1xf32>,
    %c0_i32_23 = arith.constant 0 : i32
    %39 = arith.cmpi eq, %arg1, %c0_i32_23 : i32
    %40 = arith.extui %39 : i1 to i32
    %c0_i32_24 = arith.constant 0 : i32
    %41 = arith.cmpi ne, %40, %c0_i32_24 : i32
    scf.if %41 {
      %c0_25 = arith.constant 0 : index
      %c1 = arith.constant 1 : index
      %42 = vector.load %arg3[%c0_25, %c1] : memref<8x2xi32, #tpu.memory_space<vmem>>, vector<8x1xi32>
      %43 = tpu.bitcast %42 : vector<8x1xi32> -> vector<8x1xf32>
      %c0_26 = arith.constant 0 : index
      %c0_27 = arith.constant 0 : index
      %44 = vector.load %arg7[%c0_26, %c0_27] : memref<8x1xf32, #tpu.memory_space<vmem>>, vector<8x1xf32>
      %c0_28 = arith.constant 0 : index
      %c0_29 = arith.constant 0 : index
      %45 = vector.load %arg5[%c0_28, %c0_29] : memref<8x1xf32, #tpu.memory_space<vmem>>, vector<8x1xf32>
      %46 = arith.subf %44, %45 : vector<8x1xf32>
      %47 = math.exp %46 : vector<8x1xf32>
      %cst_30 = arith.constant 4.000000e+00 : f32
      %48 = vector.broadcast %cst_30 : f32 to vector<8x1xf32>
      %49 = arith.mulf %48, %47 : vector<8x1xf32>
      %c0_31 = arith.constant 0 : index
      %c0_32 = arith.constant 0 : index
      %50 = vector.load %arg8[%c0_31, %c0_32] : memref<8x1xf32, #tpu.memory_space<vmem>>, vector<8x1xf32>
      %c0_33 = arith.constant 0 : index
      %c0_34 = arith.constant 0 : index
      %51 = vector.load %arg5[%c0_33, %c0_34] : memref<8x1xf32, #tpu.memory_space<vmem>>, vector<8x1xf32>
      %52 = arith.subf %50, %51 : vector<8x1xf32>
      %53 = math.exp %52 : vector<8x1xf32>
      %54 = arith.addf %49, %53 : vector<8x1xf32>
      %55 = math.log %54 : vector<8x1xf32>
      %c0_35 = arith.constant 0 : index
      %c0_36 = arith.constant 0 : index
      %56 = vector.load %arg6[%c0_35, %c0_36] : memref<8x1xf32, #tpu.memory_space<vmem>>, vector<8x1xf32>
      %57 = math.log %56 : vector<8x1xf32>
      %58 = arith.subf %55, %57 : vector<8x1xf32>
      %59 = arith.mulf %43, %58 : vector<8x1xf32>
      %cst_37 = arith.constant 0.000000e+00 : f32
      %60 = vector.broadcast %cst_37 : f32 to vector<8x1xf32>
      %61 = arith.subf %60, %59 : vector<8x1xf32>
      %c0_38 = arith.constant 0 : index
      %c0_39 = arith.constant 0 : index
      %62 = vector.load %arg4[%c0_38, %c0_39] : memref<8x1xf32, #tpu.memory_space<vmem>>, vector<8x1xf32>
      tpu.vector_store %arg4[%c0_38, %c0_39], %61 {strides = array<i32>} : memref<8x1xf32, #tpu.memory_space<vmem>>, vector<8x1xf32>,
    } else {
    }
    return
  }
  func.func @transform_0(%arg0: i32, %arg1: i32) -> (i32, i32) {
    %c0_i32 = arith.constant 0 : i32
    return %arg0, %arg1 : i32, i32
  }
  func.func @transform_1(%arg0: i32, %arg1: i32) -> (i32, i32) {
    %c0_i32 = arith.constant 0 : i32
    %c0_i32_0 = arith.constant 0 : i32
    return %arg0, %c0_i32 : i32, i32
  }
  func.func @transform_2(%arg0: i32, %arg1: i32) -> (i32, i32) {
    %c0_i32 = arith.constant 0 : i32
    %c0_i32_0 = arith.constant 0 : i32
    return %arg0, %c0_i32 : i32, i32
  }
}

</mosaic_0001>

<llo_original>
// kernel: tpu_custom_call.1
$region0: #{tpu_custom_call.1}
  #allocation0 [shape = 'u32[]', space=smem, size = 0x4, offset = 0x4, fixed_abs, tag = 'smem constant byte address 0x4 - core index']
  #allocation1 [shape = 'u32[72,128]{1,0:T(1,128)}', space=vmem, size = 0x9000, scoped, tag = 'internal scratch']
  #allocation2 [shape = 'f32[8,1]{1,0:T(8,128)}', space=vmem, size = 0x1000, scoped, tag = 'scratch operand']
  #allocation3 [shape = 'f32[8,1]{1,0:T(8,128)}', space=vmem, size = 0x1000, scoped, tag = 'scratch operand']
  #allocation4 [shape = 'f32[8,1]{1,0:T(8,128)}', space=vmem, size = 0x1000, scoped, tag = 'scratch operand']
  #allocation5 [shape = 'f32[8,1]{1,0:T(8,128)}', space=vmem, size = 0x1000, scoped, tag = 'scratch operand']
  %s0 = inlined_call_operand.vmem [shape: f32[64,32], index: 0, kind: input, shape index: {}]
  %s1 = inlined_call_operand.vmem [shape: s32[64,2], index: 1, kind: input, shape index: {}]
  %s2 = inlined_call_operand.vmem [shape: f32[64,1], index: 2, kind: output, shape index: {}]
  %s3 = sld [smem:[#allocation0]]
  $region53: #{tpu_custom_call.1} parent=0
    _
  %s5 = ssub.s32 1, %s3
  %s6 = scalar_select 0, %s5, %s3
  loop: start=0, step=1, limit=10
  $region2: #{tpu_custom_call.1} parent=0 // loop_pre_header
    _
  $region3: #{tpu_custom_call.1} parent=0 // loop_header
    %s8 = sphi 0, %s12
    %p9 = scmp.ge.s32.totalorder %s8, 10
    %s15 = sphi 0, %s27
    %s16 = sphi 0, %s23
    %s17 = sphi 0, %s15
    %s18 = sphi 0, %s16
    %s19 = sphi 0, %s17
    %s20 = sphi 0, %s18
    %s32 = sphi 0, %s34
    %s35 = sphi 0, %s32
    %s36 = sphi 0, %s35
    %s52 = sphi 0, %s36
    %s58 = sphi 0, %s60
    %s61 = sphi 0, %s58
    %s62 = sphi 0, %s61
    %s78 = sphi 0, %s62
    %s84 = sphi 0, %s86
    %s87 = sphi 0, %s84
    %s88 = sphi 0, %s87
    %s104 = sphi 0, %s88
  $region4: #{tpu_custom_call.1} parent=0 // loop_header_branch
    %11 = sbr.rel (%p9) target = $region8
  $region5: #{tpu_custom_call.1} parent=0 // loop_body
    %s13 = ssub.s32 %s8, 1
    %s14 = ssub.s32 %s8, 2
    %s21 = sadd.s32 1, %s16
    %p22 = scmp.ge.s32.totalorder %s21, 1
    %s23 = scalar_select %p22, 0, %s21
    %s24 = sadd.s32 1, %s15
    %s25 = scalar_select %p22, %s24, %s15
    %p26 = scmp.ge.s32.totalorder %s25, 8
    %s27 = scalar_select %p26, 0, %s25
    %s28 = ssub.s32 %s15, %s27
    %s29 = ssub.s32 %s16, %s23
    %s30 = sor.u32 %s28, %s29
    %p31 = scmp.eq.s32.totalorder %s30, 0
    %s33 = sadd.s32 %s32, 1
    %s34 = scalar_select %p31, %s32, %s33
    %p37 = pneg %p31
    %p38 = scmp.eq.s32.totalorder %s8, 7
    %p39 = por %p37, %p38
    %p40 = scmp.ne.s32.totalorder %s32, %s35
    %p41 = scmp.eq.s32.totalorder %s8, 0
    %p42 = por %p40, %p41
    %p43 = scmp.ne.s32.totalorder %s32, %s35
    %p44 = scmp.eq.s32.totalorder %s13, 7
    %p45 = por %p43, %p44
    %p46 = scmp.ne.s32.totalorder %s35, %s36
    %p47 = scmp.eq.s32.totalorder %s13, 0
    %p48 = por %p46, %p47
    %p49 = scmp.ne.s32.totalorder %s35, %s36
    %p50 = scmp.eq.s32.totalorder %s14, 7
    %p51 = por %p49, %p50
    %p53 = scmp.ne.s32.totalorder %s36, %s52
    %p54 = scmp.eq.s32.totalorder %s14, 0
    %p55 = por %p53, %p54
    %s56 = ssub.s32 %s15, %s27
    %p57 = scmp.eq.s32.totalorder %s56, 0
    %s59 = sadd.s32 %s58, 1
    %s60 = scalar_select %p57, %s58, %s59
    %p63 = pneg %p57
    %p64 = scmp.eq.s32.totalorder %s8, 7
    %p65 = por %p63, %p64
    %p66 = scmp.ne.s32.totalorder %s58, %s61
    %p67 = scmp.eq.s32.totalorder %s8, 0
    %p68 = por %p66, %p67
    %p69 = scmp.ne.s32.totalorder %s58, %s61
    %p70 = scmp.eq.s32.totalorder %s13, 7
    %p71 = por %p69, %p70
    %p72 = scmp.ne.s32.totalorder %s61, %s62
    %p73 = scmp.eq.s32.totalorder %s13, 0
    %p74 = por %p72, %p73
    %p75 = scmp.ne.s32.totalorder %s61, %s62
    %p76 = scmp.eq.s32.totalorder %s14, 7
    %p77 = por %p75, %p76
    %p79 = scmp.ne.s32.totalorder %s62, %s78
    %p80 = scmp.eq.s32.totalorder %s14, 0
    %p81 = por %p79, %p80
    %s82 = ssub.s32 %s15, %s27
    %p83 = scmp.eq.s32.totalorder %s82, 0
    %s85 = sadd.s32 %s84, 1
    %s86 = scalar_select %p83, %s84, %s85
    %p89 = pneg %p83
    %p90 = scmp.eq.s32.totalorder %s8, 7
    %p91 = por %p89, %p90
    %p92 = scmp.ne.s32.totalorder %s84, %s87
    %p93 = scmp.eq.s32.totalorder %s8, 0
    %p94 = por %p92, %p93
    %p95 = scmp.ne.s32.totalorder %s84, %s87
    %p96 = scmp.eq.s32.totalorder %s13, 7
    %p97 = por %p95, %p96
    %p98 = scmp.ne.s32.totalorder %s87, %s88
    %p99 = scmp.eq.s32.totalorder %s13, 0
    %p100 = por %p98, %p99
    %p101 = scmp.ne.s32.totalorder %s87, %s88
    %p102 = scmp.eq.s32.totalorder %s14, 7
    %p103 = por %p101, %p102
    %p105 = scmp.ne.s32.totalorder %s88, %s104
    %p106 = scmp.eq.s32.totalorder %s14, 0
    %p107 = por %p105, %p106
    %p108 = scmp.le.s32.totalorder 1, %s8
    %p109 = scmp.lt.s32.totalorder %s8, 9
    %p110 = pnand %p108, %p109
    %p111 = pneg %p110
    // Predicated region
    $region9: #{tpu_custom_call.1} parent=5 // pred_check
      _
    $region10: #{tpu_custom_call.1} parent=5 // pred_check_branch
      %113 = sbr.rel (%p110) target = $region12
    $region11: #{tpu_custom_call.1} parent=5 // pred_region
      %s114 = ssub.s32 %s8, 1
    $region12: #{tpu_custom_call.1} parent=5 // pred_fallthru
      _
    %p115 = scmp.lt.s32.totalorder %s8, 8
    // Predicated region
    $region13: #{tpu_custom_call.1} parent=5 // pred_check
      %p116 = pneg %p115
    $region14: #{tpu_custom_call.1} parent=5 // pred_check_branch
      %118 = sbr.rel (%p116) target = $region16
    $region15: #{tpu_custom_call.1} parent=5 // pred_region
      // Predicated region
      $region17: #{tpu_custom_call.1} parent=15 // pred_check
        %p119 = pneg %p42
      $region18: #{tpu_custom_call.1} parent=15 // pred_check_branch
        %121 = sbr.rel (%p119) target = $region20
      $region19: #{tpu_custom_call.1} parent=15 // pred_region
        %p122 = scmp.lt.s32.totalorder %s15, 7
        %s123 = scalar_select %p122, %s15, 7
        %p124 = scmp.lt.s32.totalorder %s16, 0
        %s125 = scalar_select %p124, %s16, 0
        %s126 = sadd.s32 %s125, %s123
        %s127 = smul.addr %s126, 8
        %s128 = scalar_lea.vmem %s0, %s127
      $region20: #{tpu_custom_call.1} parent=15 // pred_fallthru
        _
      // Predicated region
      $region21: #{tpu_custom_call.1} parent=15 // pred_check
        %p129 = pneg %p68
      $region22: #{tpu_custom_call.1} parent=15 // pred_check_branch
        %131 = sbr.rel (%p129) target = $region24
      $region23: #{tpu_custom_call.1} parent=15 // pred_region
        %p132 = scmp.lt.s32.totalorder %s15, 7
        %s133 = scalar_select %p132, %s15, 7
        %s134 = smul.addr %s133, 8
        %s135 = scalar_lea.vmem %s1, %s134
      $region24: #{tpu_custom_call.1} parent=15 // pred_fallthru
        _
    $region16: #{tpu_custom_call.1} parent=5 // pred_fallthru
      _
    %p136 = scmp.le.s32.totalorder 1, %s8
    %p137 = scmp.lt.s32.totalorder %s8, 9
    %p138 = pnand %p136, %p137
    %p139 = pneg %p138
    // Predicated region
    $region25: #{tpu_custom_call.1} parent=5 // pred_check
      _
    $region26: #{tpu_custom_call.1} parent=5 // pred_check_branch
      %141 = sbr.rel (%p138) target = $region28
    $region27: #{tpu_custom_call.1} parent=5 // pred_region
      %s142 = ssub.s32 %s8, 1
      %p143 = scmp.lt.s32.totalorder %s17, 7
      %s144 = scalar_select %p143, %s17, 7
      %p145 = scmp.lt.s32.totalorder %s18, 0
      %s146 = scalar_select %p145, %s18, 0
      %s147 = sadd.s32 %s146, %s144
      %s148 = smul.addr %s147, 8
      %s149 = scalar_lea.vmem %s0, %s148
      %p150 = pneg %p48
      %p151 = pneg %p45
      %p152 = scmp.lt.s32.totalorder %s17, 7
      %s153 = scalar_select %p152, %s17, 7
      %s154 = smul.addr %s153, 8
      %s155 = scalar_lea.vmem %s1, %s154
      %p156 = pneg %p74
      %p157 = pneg %p71
      %p158 = pneg %p100
      %p159 = pneg %p97
      %p160 = scmp.lt.s32.totalorder %s17, 7
      %s161 = scalar_select %p160, %s17, 7
      %s162 = smul.addr %s161, 8
      %s163 = scalar_lea.vmem %s2, %s162
      %p164 = scmp.lt.s32.totalorder %s17, 7
      %s165 = scalar_select %p164, %s17, 7
      %p166 = scmp.lt.s32.totalorder %s18, 0
      %s167 = scalar_select %p166, %s18, 0
      %s168 = sadd.s32 %s167, %s165
      %s169 = smul.addr %s168, 8
      %s170 = scalar_lea.vmem %s0, %s169
      %p171 = scmp.lt.s32.totalorder %s17, 7
      %s172 = scalar_select %p171, %s17, 7
      %s173 = smul.addr %s172, 8
      %s174 = scalar_lea.vmem %s1, %s173
      %p175 = scmp.lt.s32.totalorder %s17, 7
      %s176 = scalar_select %p175, %s17, 7
      %s177 = smul.addr %s176, 8
      %s178 = scalar_lea.vmem %s2, %s177
      %p179 = scmp.eq.s32.totalorder %s18, 0
      // Predicated region
      $region29: #{tpu_custom_call.1} parent=27 // pred_check
        %p180 = pneg %p179
      $region30: #{tpu_custom_call.1} parent=27 // pred_check_branch
        %182 = sbr.rel (%p180) target = $region32
      $region31: #{tpu_custom_call.1} parent=27 // pred_region
        %vm183 = vcmask 7168
        %184 = vst.msk [vmem:[#allocation2] sm:$0xff] %vm183, -inf
        %185 = vst.msk [vmem:[#allocation3] sm:$0xff] %vm183, 0.0
        %186 = vst.msk [vmem:[#allocation4] sm:$0xff] %vm183, 0.0
      $region32: #{tpu_custom_call.1} parent=27 // pred_fallthru
        _
      %v187 = vld [vmem:[%s170] sm:$0xff]
      %v188 = vld [vmem:[%s174] sm:$0xff]
      %v189 = vlaneseq
      %v190 = vand.u32 %v189, 127
      %s191 = smul.u32 %s18, 32
      %v192 = vstv %s191
      %v193 = vadd.s32 %v190, %v192
      %194 = vset.pattern.permute.xlu0 0
      %195 = vperm.xlu0 %194, %v188
      %v196 = vpop.permute.xlu0 %195
      %vm197 = vcmp.eq.s32.totalorder %v193, %v196
      %v198 = vsel %vm197, %v187, 0.0
      %vm199 = vcmask 261120
      %v200 = vsel %vm199, %v198, 0.0
      %201 = vadd.xlane.f32.xlu0 %v200
      %v202 = vpop.xlane.xlu0 %201
      %v203 = vld [vmem:[#allocation4] sm:$0xff]
      %v204 = vadd.f32 %v203, %v202
      %vm205 = vcmask 7168
      %206 = vst.msk [vmem:[#allocation4] sm:$0xff] %vm205, %v204
      // Predicated region
      $region33: #{tpu_custom_call.1} parent=27 // pred_check
        %p207 = pneg %p179
      $region34: #{tpu_custom_call.1} parent=27 // pred_check_branch
        %209 = sbr.rel (%p207) target = $region36
      $region35: #{tpu_custom_call.1} parent=27 // pred_region
        %211 = vrot.lane.b32.xlu0 %v187, 126
        %v212 = vpop.permute.xlu0 %211
        %214 = vst.msk [vmem:[#allocation5] sm:$0xff] %vm205, %v212
      $region36: #{tpu_custom_call.1} parent=27 // pred_fallthru
        _
      %v215 = vsel %vm199, %v187, -inf
      %216 = vmax.xlane.f32.xlu0 %v215
      %v217 = vpop.xlane.xlu0 %216
      %v218 = vld [vmem:[#allocation2] sm:$0xff]
      %v219 = vmax.f32 %v218, %v217
      %v220 = vld [vmem:[#allocation3] sm:$0xff]
      %v221 = vsub.f32 %v218, %v219
      %v222 = vmul.f32 %v221, 1.442695
      %v223 = vpow.pop %v222
      %v224 = vmul.f32 %v220, %v223
      %226 = vset.pattern.permute.xlu0 0
      %227 = vperm.xlu0 %226, %v219
      %v228 = vpop.permute.xlu0 %227
      %v230 = vsub.f32 %v187, %v228
      %v231 = vmul.f32 %v230, 1.442695
      %v232 = vpow.pop %v231
      %v233 = vsel %vm199, %v232, 0.0
      %234 = vadd.xlane.f32.xlu0 %v233
      %v235 = vpop.xlane.xlu0 %234
      %v236 = vadd.f32 %v224, %v235
      %237 = vst.msk [vmem:[#allocation3] sm:$0xff] %vm205, %v236
      %238 = vst.msk [vmem:[#allocation2] sm:$0xff] %vm205, %v219
      // Predicated region
      $region37: #{tpu_custom_call.1} parent=27 // pred_check
        %p239 = pneg %p179
      $region38: #{tpu_custom_call.1} parent=27 // pred_check_branch
        %241 = sbr.rel (%p239) target = $region40
      $region39: #{tpu_custom_call.1} parent=27 // pred_region
        %v242 = vld [vmem:[%s174] sm:$0xff]
        %v244 = vld [vmem:[#allocation4] sm:$0xff]
        %v245 = vld [vmem:[#allocation2] sm:$0xff]
        %v246 = vsub.f32 %v244, %v245
        %v247 = vmul.f32 %v246, 1.442695
        %v248 = vpow.pop %v247
        %v249 = vmul.f32 %v248, 4.0
        %v250 = vld [vmem:[#allocation5] sm:$0xff]
        %v251 = vsub.f32 %v250, %v245
        %v252 = vmul.f32 %v251, 1.442695
        %v253 = vpow.pop %v252
        %v254 = vadd.f32 %v249, %v253
        %v255 = vlog2.pop %v254
        %v256 = vmul.f32 %v255, 0.6931472
        %v257 = vld [vmem:[#allocation3] sm:$0xff]
        %v258 = vlog2.pop %v257
        %v259 = vmul.f32 %v258, 0.6931472
        %v260 = vsub.f32 %v256, %v259
        %262 = vrot.lane.b32.xlu0 %v260, 1
        %v263 = vpop.permute.xlu0 %262
        %v265 = vmul.f32 %v242, %v263
        %v266 = vsub.f32 0.0, %v265
        %268 = vrot.lane.b32.xlu0 %v266, 127
        %v269 = vpop.permute.xlu0 %268
        %271 = vst.msk [vmem:[%s178] sm:$0xff] %vm205, %v269
      $region40: #{tpu_custom_call.1} parent=27 // pred_fallthru
        _
      %p272 = scmp.lt.s32.totalorder %s17, 7
      %s273 = scalar_select %p272, %s17, 7
      %s274 = smul.addr %s273, 8
      %s275 = scalar_lea.vmem %s2, %s274
      // Predicated region
      $region41: #{tpu_custom_call.1} parent=27 // pred_check
        %p276 = pneg %p97
      $region42: #{tpu_custom_call.1} parent=27 // pred_check_branch
        %278 = sbr.rel (%p276) target = $region44
      $region43: #{tpu_custom_call.1} parent=27 // pred_region
        _
      $region44: #{tpu_custom_call.1} parent=27 // pred_fallthru
        _
    $region28: #{tpu_custom_call.1} parent=5 // pred_fallthru
      _
    %p279 = scmp.le.s32.totalorder 2, %s8
    // Predicated region
    $region45: #{tpu_custom_call.1} parent=5 // pred_check
      %p280 = pneg %p279
    $region46: #{tpu_custom_call.1} parent=5 // pred_check_branch
      %282 = sbr.rel (%p280) target = $region48
    $region47: #{tpu_custom_call.1} parent=5 // pred_region
      %s283 = ssub.s32 %s8, 2
      // Predicated region
      $region49: #{tpu_custom_call.1} parent=47 // pred_check
        %p284 = pneg %p103
      $region50: #{tpu_custom_call.1} parent=47 // pred_check_branch
        %286 = sbr.rel (%p284) target = $region52
      $region51: #{tpu_custom_call.1} parent=47 // pred_region
        %p287 = scmp.lt.s32.totalorder %s19, 7
        %s288 = scalar_select %p287, %s19, 7
        %s289 = smul.addr %s288, 8
        %s290 = scalar_lea.vmem %s2, %s289
      $region52: #{tpu_custom_call.1} parent=47 // pred_fallthru
        _
    $region48: #{tpu_custom_call.1} parent=5 // pred_fallthru
      _
  $region6: #{tpu_custom_call.1} parent=0 // loop_footer
    %s12 = sadd.s32 1, %s8
  $region7: #{tpu_custom_call.1} parent=0 // loop_footer_branch
    %7 = sbr.rel target = $region3
  $region8: #{tpu_custom_call.1} parent=0 // loop_exit
    _

</llo_original>
